<compile_context>
chip_gen: v5e
topology: v5e:2x2
jax: 0.10.0
libtpu: 0.0.40
codegen_flags: <defaults>
</compile_context>

<pallas_src>
import functools

import jax
import jax.numpy as jnp
from jax.experimental import pallas as pl
from jax.experimental.pallas import tpu as pltpu

_LANE = 128
_VMEM_LIMIT = 48 * 1024 * 1024  # below v7x's 64 MiB physical; plenty elsewhere


def _compute_g(z_ref, y_ref, eps, use_log):
    z = z_ref[...].astype(jnp.float32)
    y = y_ref[...].astype(jnp.float32)
    if use_log:
        # log((z+eps)/(y+eps)) == log(z+eps) - log(y+eps), but a single EUP
        # transcendental per element (keeps the kernel HBM-bound on v7x).
        return jnp.log((z + eps) / (y + eps))
    return z - y


# ---------------------------------------------------------------------------
# Fast path: N % 128 == 0.  Inputs viewed as (B, M, 128); sublane-dense blocks.
# ---------------------------------------------------------------------------
def _si_mse_kernel_3d(z_ref, y_ref, s1_ref, s2_ref, *, eps, use_log, tile_m,
                      m_total, need_mask):
    t = pl.program_id(2)

    @pl.when(t == 0)
    def _():
        s1_ref[...] = jnp.zeros_like(s1_ref)
        s2_ref[...] = jnp.zeros_like(s2_ref)

    g = _compute_g(z_ref, y_ref, eps, use_log)

    if need_mask:
        # Zero rows beyond the true M (tail tile and/or extra tiles created by
        # the parallel split).  Out-of-bounds block data is unspecified; the
        # select drops it before it can reach the accumulators.
        t_global = pl.program_id(1) * pl.num_programs(2) + t
        row = t_global * tile_m + jax.lax.broadcasted_iota(jnp.int32, g.shape, 1)
        g = jnp.where(row < m_total, g, 0.0)

    # Lane-wise partial sums, accumulated in the resident output block.
    s1_ref[...] += jnp.sum(g, axis=1)[None]
    s2_ref[...] += jnp.sum(g * g, axis=1)[None]


def _per_sample_3d(z3, y3, *, use_log, eps, n, target_block_bytes):
    B, M, lane = z3.shape
    assert lane == _LANE
    itemsize = z3.dtype.itemsize
    sub = {4: 8, 2: 16, 1: 32}.get(itemsize, 8)  # sublane granularity per dtype

    # --- choose batch block (bb) and row tile (tile_m) ---------------------
    max_bb = max(1, target_block_bytes // (sub * _LANE * itemsize))
    if B <= max_bb or B <= 8:
        bb = B                                   # whole batch in one block
    else:
        bb = max(8, (min(B, max_bb) // 8) * 8)   # multiple of 8 (layout-safe)
    nb = pl.cdiv(B, bb)

    elems_per_block = max(1, target_block_bytes // itemsize)
    tile_m = max(sub, (elems_per_block // (bb * _LANE)) // sub * sub)
    if tile_m >= M:
        tile_m = M                               # full dim — always legal
    num_tiles = pl.cdiv(M, tile_m)

    # Split the reduction into P independent chunks -> a "parallel" grid axis
    # that v7x's two TensorCores can shard; partials are combined in JAX.
    P = 2 if num_tiles >= 2 else 1
    T = pl.cdiv(num_tiles, P)
    need_mask = (M % tile_m != 0) or (num_tiles % P != 0)

    def in_map(b, p, t):
        # Clamp so the last (possibly empty) chunk re-reads a valid block; the
        # in-kernel row mask zeroes its contribution.
        return (b, jnp.minimum(p * T + t, num_tiles - 1), 0)

    def out_map(b, p, t):
        return (p, b, 0)

    kernel = functools.partial(_si_mse_kernel_3d, eps=eps, use_log=use_log,
                               tile_m=tile_m, m_total=M, need_mask=need_mask)

    s1, s2 = pl.pallas_call(
        kernel,
        out_shape=(jax.ShapeDtypeStruct((P, B, _LANE), jnp.float32),
                   jax.ShapeDtypeStruct((P, B, _LANE), jnp.float32)),
        grid_spec=pltpu.PrefetchScalarGridSpec(
            num_scalar_prefetch=0,
            grid=(nb, P, T),
            in_specs=[
                pl.BlockSpec((bb, tile_m, _LANE), in_map),
                pl.BlockSpec((bb, tile_m, _LANE), in_map),
            ],
            out_specs=[
                pl.BlockSpec((1, bb, _LANE), out_map),
                pl.BlockSpec((1, bb, _LANE), out_map),
            ],
        ),
        compiler_params=pltpu.CompilerParams(
            dimension_semantics=("parallel", "parallel", "arbitrary"),
            vmem_limit_bytes=_VMEM_LIMIT,
        ),
    )(z3, y3)

    s1 = jnp.sum(s1, axis=(0, 2))  # (B,) combine parallel chunks + lanes
    s2 = jnp.sum(s2, axis=(0, 2))  # (B,)
    nf = jnp.float32(n)
    return s2 / nf - (s1 * s1) / (nf * nf)


# ---------------------------------------------------------------------------
# Fallback: N not divisible by 128 — masked 2-D (B, N) layout, no padding.
# ---------------------------------------------------------------------------
def _si_mse_kernel_2d(z_ref, y_ref, out_ref, s1_ref, s2_ref, *, eps, use_log,
                      tile_n, n_total, need_mask):
    k = pl.program_id(0)

    @pl.when(k == 0)
    def _():
        s1_ref[...] = jnp.zeros_like(s1_ref)
        s2_ref[...] = jnp.zeros_like(s2_ref)

    g = _compute_g(z_ref, y_ref, eps, use_log)
    if need_mask:
        col = k * tile_n + jax.lax.broadcasted_iota(jnp.int32, g.shape, 1)
        g = jnp.where(col < n_total, g, 0.0)

    s1_ref[...] += jnp.sum(g, axis=1, keepdims=True)
    s2_ref[...] += jnp.sum(g * g, axis=1, keepdims=True)

    @pl.when(k == pl.num_programs(0) - 1)
    def _():
        nf = jnp.float32(n_total)
        s1 = s1_ref[...]
        out_ref[...] = s2_ref[...] / nf - (s1 * s1) / (nf * nf)


def _per_sample_2d(z2, y2, *, use_log, eps, target_block_bytes):
    B, n = z2.shape
    itemsize = z2.dtype.itemsize
    if n <= _LANE:
        tile_n = n                                   # full dim — legal block
    else:
        budget = max(_LANE, min(target_block_bytes // (itemsize * B), n))
        tile_n = max(_LANE, (budget // _LANE) * _LANE)
    num_tiles = pl.cdiv(n, tile_n)
    need_mask = (n % tile_n) != 0

    kernel = functools.partial(_si_mse_kernel_2d, eps=eps, use_log=use_log,
                               tile_n=tile_n, n_total=n, need_mask=need_mask)

    out = pl.pallas_call(
        kernel,
        out_shape=jax.ShapeDtypeStruct((B, 1), jnp.float32),
        grid_spec=pltpu.PrefetchScalarGridSpec(
            num_scalar_prefetch=0,
            grid=(num_tiles,),
            in_specs=[
                pl.BlockSpec((B, tile_n), lambda k: (0, k)),
                pl.BlockSpec((B, tile_n), lambda k: (0, k)),
            ],
            out_specs=pl.BlockSpec((B, 1), lambda k: (0, 0)),
            scratch_shapes=[
                pltpu.VMEM((B, 1), jnp.float32),
                pltpu.VMEM((B, 1), jnp.float32),
            ],
        ),
        compiler_params=pltpu.CompilerParams(
            dimension_semantics=("arbitrary",),
            vmem_limit_bytes=_VMEM_LIMIT,
        ),
    )(z2, y2)
    return out[:, 0]


# ---------------------------------------------------------------------------
# Public wrapper (matches ScaleInvariantMSELoss.forward semantics)
# ---------------------------------------------------------------------------
def scale_invariant_mse_loss(z, y, *, use_log=True, reduction="mean",
                             eps=1e-8, target_block_bytes=4 << 20):
    """Pallas TPU implementation of ScaleInvariantMSELoss.forward.

    z, y: same shape (B, ...), e.g. NCHW.  loss_b = sum(g^2)/n - (sum g)^2/n^2
    with g = log(z+eps) - log(y+eps) (or z - y), reduced over the batch.
    """
    assert z.shape == y.shape, (z.shape, y.shape)
    B = z.shape[0]
    n = 1
    for d in z.shape[1:]:
        n *= int(d)

    if n % _LANE == 0 and n >= _LANE:
        z3 = z.reshape(B, n // _LANE, _LANE)   # pure reshape, no copy/transpose
        y3 = y.reshape(B, n // _LANE, _LANE)
        per_sample = _per_sample_3d(z3, y3, use_log=use_log, eps=eps, n=n,
                                    target_block_bytes=target_block_bytes)
    else:
        # N not divisible by 128: simpler (B, N) layout with in-kernel masking
        # (sublane occupancy is B/8 there — acceptable as a fallback).
        per_sample = _per_sample_2d(z.reshape(B, n), y.reshape(B, n),
                                    use_log=use_log, eps=eps,
                                    target_block_bytes=target_block_bytes)

    if reduction == "mean":
        return jnp.mean(per_sample)
    elif reduction == "sum":
        return jnp.sum(per_sample)
    elif reduction == "none":
        return per_sample
    else:
        raise ValueError('reduction must be "mean", "sum" or "none"')


# ---------------------------------------------------------------------------
# Pure-JAX reference + self-test
# ---------------------------------------------------------------------------
def _reference(z, y, *, use_log=True, eps=1e-8):
    if use_log:
        g = jnp.log(z + eps) - jnp.log(y + eps)
    else:
        g = z - y
    B = g.shape[0]
    g = g.reshape(B, -1).astype(jnp.float32)
    n = g.shape[1]
    per = jnp.sum(g * g, axis=1) / n - jnp.sum(g, axis=1) ** 2 / n ** 2
    return jnp.mean(per)


def _check(shape, **kwargs):
    kz, ky = jax.random.split(jax.random.PRNGKey(0))
    # Strictly positive inputs (the loss takes log of the inputs).
    z = jax.random.uniform(kz, shape, jnp.float32, minval=0.1, maxval=2.0)
    y = jax.random.uniform(ky, shape, jnp.float32, minval=0.1, maxval=2.0)
    out = jax.block_until_ready(scale_invariant_mse_loss(z, y, **kwargs))
    ref = _reference(z, y)
    assert jnp.allclose(out, ref, rtol=1e-4, atol=1e-6), (shape, out, ref)


if __name__ == "__main__":
    # Main NCHW case (N = 1024): sublane-dense 3-D path, single block.
    _check((2, 4, 16, 16))
    # Tiny block budget: forces tiling + 2-way parallel split + row masking.
    _check((2, 5, 16, 16), target_block_bytes=8192)
    # N = 273 (not a multiple of 128): masked 2-D fallback path.
    _check((2, 3, 7, 13))
    print("KERNEL_OK")
</pallas_src>

<mosaic_0001>
module attributes {stable_mosaic.version = 11 : i64} {
  func.func @_si_mse_kernel_3d(%arg0: i32, %arg1: i32, %arg2: i32, %arg3: memref<2x8x128xf32, #tpu.memory_space<vmem>>, %arg4: memref<2x8x128xf32, #tpu.memory_space<vmem>>, %arg5: memref<1x2x128xf32, #tpu.memory_space<vmem>>, %arg6: memref<1x2x128xf32, #tpu.memory_space<vmem>>) attributes {dimension_semantics = [#tpu.dimension_semantics<parallel>, #tpu.dimension_semantics<parallel>, #tpu.dimension_semantics<arbitrary>], iteration_bounds = array<i64: 1, 1, 1>, scalar_prefetch = 0 : i64, scratch_operands = 0 : i64, tpu.core_type = #tpu.core_type<tc>, window_params = [{transform_indices = @transform_0, window_bounds = array<i64: 2, 8, 128>}, {transform_indices = @transform_1, window_bounds = array<i64: 2, 8, 128>}, {transform_indices = @transform_2, window_bounds = array<i64: 1, 2, 128>}, {transform_indices = @transform_3, window_bounds = array<i64: 1, 2, 128>}]} {
    %c0_i32 = arith.constant 0 : i32
    %0 = arith.cmpi eq, %arg2, %c0_i32 : i32
    %1 = arith.extui %0 : i1 to i32
    %c0_i32_0 = arith.constant 0 : i32
    %2 = arith.cmpi ne, %1, %c0_i32_0 : i32
    scf.if %2 {
      %cst_21 = arith.constant 0.000000e+00 : f32
      %22 = vector.broadcast %cst_21 : f32 to vector<1x2x128xf32>
      %c0_22 = arith.constant 0 : index
      %c0_23 = arith.constant 0 : index
      %c0_24 = arith.constant 0 : index
      %23 = vector.load %arg5[%c0_22, %c0_23, %c0_24] : memref<1x2x128xf32, #tpu.memory_space<vmem>>, vector<1x2x128xf32>
      tpu.vector_store %arg5[%c0_22, %c0_23, %c0_24], %22 {strides = array<i32>} : memref<1x2x128xf32, #tpu.memory_space<vmem>>, vector<1x2x128xf32>,
      %cst_25 = arith.constant 0.000000e+00 : f32
      %24 = vector.broadcast %cst_25 : f32 to vector<1x2x128xf32>
      %c0_26 = arith.constant 0 : index
      %c0_27 = arith.constant 0 : index
      %c0_28 = arith.constant 0 : index
      %25 = vector.load %arg6[%c0_26, %c0_27, %c0_28] : memref<1x2x128xf32, #tpu.memory_space<vmem>>, vector<1x2x128xf32>
      tpu.vector_store %arg6[%c0_26, %c0_27, %c0_28], %24 {strides = array<i32>} : memref<1x2x128xf32, #tpu.memory_space<vmem>>, vector<1x2x128xf32>,
    } else {
    }
    %c0 = arith.constant 0 : index
    %c0_1 = arith.constant 0 : index
    %c0_2 = arith.constant 0 : index
    %3 = vector.load %arg3[%c0, %c0_1, %c0_2] : memref<2x8x128xf32, #tpu.memory_space<vmem>>, vector<2x8x128xf32>
    %c0_3 = arith.constant 0 : index
    %c0_4 = arith.constant 0 : index
    %c0_5 = arith.constant 0 : index
    %4 = vector.load %arg4[%c0_3, %c0_4, %c0_5] : memref<2x8x128xf32, #tpu.memory_space<vmem>>, vector<2x8x128xf32>
    %cst = arith.constant 9.99999993E-9 : f32
    %5 = vector.broadcast %cst : f32 to vector<2x8x128xf32>
    %6 = arith.addf %3, %5 : vector<2x8x128xf32>
    %cst_6 = arith.constant 9.99999993E-9 : f32
    %7 = vector.broadcast %cst_6 : f32 to vector<2x8x128xf32>
    %8 = arith.addf %4, %7 : vector<2x8x128xf32>
    %9 = arith.divf %6, %8 : vector<2x8x128xf32>
    %10 = math.log %9 : vector<2x8x128xf32>
    %c0_7 = arith.constant 0 : index
    %c0_8 = arith.constant 0 : index
    %c0_9 = arith.constant 0 : index
    %11 = vector.load %arg5[%c0_7, %c0_8, %c0_9] : memref<1x2x128xf32, #tpu.memory_space<vmem>>, vector<1x2x128xf32>
    %cst_10 = arith.constant dense<0.000000e+00> : vector<2x128xf32>
    %12 = vector.multi_reduction <add>, %10, %cst_10 [1] : vector<2x8x128xf32> to vector<2x128xf32>
    %13 = vector.shape_cast %12 : vector<2x128xf32> to vector<1x2x128xf32>
    %14 = arith.addf %11, %13 : vector<1x2x128xf32>
    %c0_11 = arith.constant 0 : index
    %c0_12 = arith.constant 0 : index
    %c0_13 = arith.constant 0 : index
    %15 = vector.load %arg5[%c0_11, %c0_12, %c0_13] : memref<1x2x128xf32, #tpu.memory_space<vmem>>, vector<1x2x128xf32>
    tpu.vector_store %arg5[%c0_11, %c0_12, %c0_13], %14 {strides = array<i32>} : memref<1x2x128xf32, #tpu.memory_space<vmem>>, vector<1x2x128xf32>,
    %c0_14 = arith.constant 0 : index
    %c0_15 = arith.constant 0 : index
    %c0_16 = arith.constant 0 : index
    %16 = vector.load %arg6[%c0_14, %c0_15, %c0_16] : memref<1x2x128xf32, #tpu.memory_space<vmem>>, vector<1x2x128xf32>
    %17 = arith.mulf %10, %10 : vector<2x8x128xf32>
    %cst_17 = arith.constant dense<0.000000e+00> : vector<2x128xf32>
    %18 = vector.multi_reduction <add>, %17, %cst_17 [1] : vector<2x8x128xf32> to vector<2x128xf32>
    %19 = vector.shape_cast %18 : vector<2x128xf32> to vector<1x2x128xf32>
    %20 = arith.addf %16, %19 : vector<1x2x128xf32>
    %c0_18 = arith.constant 0 : index
    %c0_19 = arith.constant 0 : index
    %c0_20 = arith.constant 0 : index
    %21 = vector.load %arg6[%c0_18, %c0_19, %c0_20] : memref<1x2x128xf32, #tpu.memory_space<vmem>>, vector<1x2x128xf32>
    tpu.vector_store %arg6[%c0_18, %c0_19, %c0_20], %20 {strides = array<i32>} : memref<1x2x128xf32, #tpu.memory_space<vmem>>, vector<1x2x128xf32>,
    return
  }
  func.func @transform_0(%arg0: i32, %arg1: i32, %arg2: i32) -> (i32, i32, i32) {
    %c1_i32 = arith.constant 1 : i32
    %0 = arith.muli %arg1, %c1_i32 : i32
    %1 = arith.addi %0, %arg2 : i32
    %c0_i32 = arith.constant 0 : i32
    %2 = arith.minsi %1, %c0_i32 : i32
    %c0_i32_0 = arith.constant 0 : i32
    %c0_i32_1 = arith.constant 0 : i32
    return %arg0, %2, %c0_i32_0 : i32, i32, i32
  }
  func.func @transform_1(%arg0: i32, %arg1: i32, %arg2: i32) -> (i32, i32, i32) {
    %c1_i32 = arith.constant 1 : i32
    %0 = arith.muli %arg1, %c1_i32 : i32
    %1 = arith.addi %0, %arg2 : i32
    %c0_i32 = arith.constant 0 : i32
    %2 = arith.minsi %1, %c0_i32 : i32
    %c0_i32_0 = arith.constant 0 : i32
    %c0_i32_1 = arith.constant 0 : i32
    return %arg0, %2, %c0_i32_0 : i32, i32, i32
  }
  func.func @transform_2(%arg0: i32, %arg1: i32, %arg2: i32) -> (i32, i32, i32) {
    %c0_i32 = arith.constant 0 : i32
    %c0_i32_0 = arith.constant 0 : i32
    return %arg1, %arg0, %c0_i32 : i32, i32, i32
  }
  func.func @transform_3(%arg0: i32, %arg1: i32, %arg2: i32) -> (i32, i32, i32) {
    %c0_i32 = arith.constant 0 : i32
    %c0_i32_0 = arith.constant 0 : i32
    return %arg1, %arg0, %c0_i32 : i32, i32, i32
  }
}

</mosaic_0001>

<llo_original>
// kernel: tpu_custom_call.1
$region0: #{tpu_custom_call.1}
  #allocation0 [shape = 'u32[]', space=smem, size = 0x4, offset = 0x4, fixed_abs, tag = 'smem constant byte address 0x4 - core index']
  #allocation1 [shape = 'u32[72,128]{1,0:T(1,128)}', space=vmem, size = 0x9000, scoped, tag = 'internal scratch']
  %s0 = inlined_call_operand.hbm [shape: f32[2,8,128], index: 0, kind: input, shape index: {}]
  %s1 = inlined_call_operand.hbm [shape: f32[2,8,128], index: 1, kind: input, shape index: {}]
  %s2 = inlined_call_operand.hbm [shape: f32[1,2,128], index: 2, kind: output, shape index: {0}]
  %s3 = inlined_call_operand.hbm [shape: f32[1,2,128], index: 3, kind: output, shape index: {1}]
  %4 = xla_tuple %s2, %s3
  %s5 = sld [smem:[#allocation0]]
  $region38: #{tpu_custom_call.1} parent=0
    _
  %s7 = ssub.s32 1, %s5
  %s8 = scalar_select 0, %s7, %s5
  $region1: #{tpu_custom_call.1} parent=0
    #allocation2 [shape = 'u8[8192]{0}', space=vmem, size = 0x2000, scoped, tag = 'input window, operand 0, single buffered']
    #allocation3 [shape = 's32[1]{0}', space=sflag, size = 0x4, scoped, tag = 'scoped memory for tpu_custom_call.1']
    #allocation4 [shape = 's32[1]{0}', space=sflag, size = 0x4, scoped, tag = 'scoped memory for tpu_custom_call.1']
    #allocation5 [shape = 'u8[8192]{0}', space=vmem, size = 0x2000, scoped, tag = 'input window, operand 1, single buffered']
    #allocation6 [shape = 's32[1]{0}', space=sflag, size = 0x4, scoped, tag = 'scoped memory for tpu_custom_call.1']
    #allocation7 [shape = 'u8[1024]{0}', space=vmem, size = 0x400, scoped, tag = 'output window, operand 0, single buffered']
    #allocation8 [shape = 'u8[1024]{0}', space=vmem, size = 0x400, scoped, tag = 'output window, operand 1, single buffered']
    #allocation9 [shape = 's32[1]{0}', space=sflag, size = 0x4, scoped, tag = 'scoped memory for tpu_custom_call.1']
    %9 = vsyncpa [#allocation3], 0
    %10 = vsyncpa [#allocation6], 0
    %11 = vsyncpa [#allocation4], 0
    %12 = vsyncpa [#allocation9], 0
    // Predicated region
    $region2: #{tpu_custom_call.1} parent=1 // pred_check
      _
    $region3: #{tpu_custom_call.1} parent=1 // pred_check_branch
      %14 = sbr.rel (0) target = $region5
    $region4: #{tpu_custom_call.1} parent=1 // pred_region
      %s15 = sadd.s32 0, 0
      %p16 = scmp.lt.s32.totalorder %s15, 0
      %s17 = scalar_select %p16, %s15, 0
      %19 = vsyncadd [#allocation3], 0
      %s20 = smul.addr %s17, 8
      %s21 = scalar_lea.hbm %s0, %s20
      %s22 = sshll.u32 %s21, 4
      %s23 = int_to_ptr.hbm [resolvable:$true] %s22
      %s24 = sshll.u32 [#allocation2], 4
      %s25 = int_to_ptr.vmem [resolvable:$true] %s24
      %30 = dma.hbm_to_vmem [thread:$0]  %s23, 256, %s25, [#allocation3], 128, 128, 8
    $region5: #{tpu_custom_call.1} parent=1 // pred_fallthru
      _
    // Predicated region
    $region6: #{tpu_custom_call.1} parent=1 // pred_check
      _
    $region7: #{tpu_custom_call.1} parent=1 // pred_check_branch
      %32 = sbr.rel (0) target = $region9
    $region8: #{tpu_custom_call.1} parent=1 // pred_region
      %s33 = sadd.s32 0, 0
      %p34 = scmp.lt.s32.totalorder %s33, 0
      %s35 = scalar_select %p34, %s33, 0
      %37 = vsyncadd [#allocation6], 0
      %s38 = smul.addr %s35, 8
      %s39 = scalar_lea.hbm %s1, %s38
      %s40 = sshll.u32 %s39, 4
      %s41 = int_to_ptr.hbm [resolvable:$true] %s40
      %s42 = sshll.u32 [#allocation5], 4
      %s43 = int_to_ptr.vmem [resolvable:$true] %s42
      %48 = dma.hbm_to_vmem [thread:$0]  %s41, 256, %s43, [#allocation6], 128, 128, 8
    $region9: #{tpu_custom_call.1} parent=1 // pred_fallthru
      _
    // Predicated region
    $region10: #{tpu_custom_call.1} parent=1 // pred_check
      _
    $region11: #{tpu_custom_call.1} parent=1 // pred_check_branch
      %50 = sbr.rel (0) target = $region13
    $region12: #{tpu_custom_call.1} parent=1 // pred_region
      %52 = dma.done [#allocation3], 256
    $region13: #{tpu_custom_call.1} parent=1 // pred_fallthru
      _
    // Predicated region
    $region14: #{tpu_custom_call.1} parent=1 // pred_check
      _
    $region15: #{tpu_custom_call.1} parent=1 // pred_check_branch
      %54 = sbr.rel (0) target = $region17
    $region16: #{tpu_custom_call.1} parent=1 // pred_region
      %56 = dma.done [#allocation6], 256
    $region17: #{tpu_custom_call.1} parent=1 // pred_fallthru
      _
    %s57 = sadd.s32 0, 0
    %p58 = scmp.lt.s32.totalorder %s57, 0
    %s59 = scalar_select %p58, %s57, 0
    %s60 = sadd.s32 0, 0
    %p61 = scmp.lt.s32.totalorder %s60, 0
    %s62 = scalar_select %p61, %s60, 0
    %p63 = scmp.eq.s32.totalorder 0, 0
    // Predicated region
    $region18: #{tpu_custom_call.1} parent=1 // pred_check
      %p64 = pneg %p63
    $region19: #{tpu_custom_call.1} parent=1 // pred_check_branch
      %66 = sbr.rel (%p64) target = $region21
    $region20: #{tpu_custom_call.1} parent=1 // pred_region
      %67 = vst [vmem:[#allocation7] sm:$0x3] 0.0
      %68 = vst [vmem:[#allocation8] sm:$0x3] 0.0
    $region21: #{tpu_custom_call.1} parent=1 // pred_fallthru
      _
    %v69 = vld [vmem:[#allocation2] sm:$0xff]
    %v70 = vld [vmem:[#allocation2 + $0x8] sm:$0xff]
    %v71 = vld [vmem:[#allocation5] sm:$0xff]
    %v72 = vld [vmem:[#allocation5 + $0x8] sm:$0xff]
    %v73 = vadd.f32 %v69, 1e-08
    %v74 = vadd.f32 %v70, 1e-08
    %v75 = vadd.f32 %v71, 1e-08
    %v76 = vadd.f32 %v72, 1e-08
    %v77 = vrcp.pop %v75
    %v78 = vmul.f32 %v75, %v77
    %v79 = vsub.f32 1.0, %v78
    %v80 = vmul.f32 %v77, %v79
    %v81 = vadd.f32 %v77, %v80
    %vm82 = vweird.f32 %v75
    %vm83 = vweird.f32 %v77
    %vm84 = vmor %vm82, %vm83
    %v85 = vsel %vm84, %v77, %v81
    %v86 = vand.u32 2147483647, %v75
    %vm87 = vcmp.eq.f32.partialorder %v86, 8.507059e+37
    %v88 = vand.u32 %v75, 2147483648
    %v89 = vor.u32 1.1754944e-38, %v88
    %v90 = vsel %vm87, %v89, %v85
    %v91 = vmul.f32 %v73, %v90
    %v92 = vrcp.pop %v76
    %v93 = vmul.f32 %v76, %v92
    %v94 = vsub.f32 1.0, %v93
    %v95 = vmul.f32 %v92, %v94
    %v96 = vadd.f32 %v92, %v95
    %vm97 = vweird.f32 %v76
    %vm98 = vweird.f32 %v92
    %vm99 = vmor %vm97, %vm98
    %v100 = vsel %vm99, %v92, %v96
    %v101 = vand.u32 2147483647, %v76
    %vm102 = vcmp.eq.f32.partialorder %v101, 8.507059e+37
    %v103 = vand.u32 %v76, 2147483648
    %v104 = vor.u32 1.1754944e-38, %v103
    %v105 = vsel %vm102, %v104, %v100
    %v106 = vmul.f32 %v74, %v105
    %v107 = vlog2.pop %v91
    %v108 = vmul.f32 %v107, 0.6931472
    %v109 = vlog2.pop %v106
    %v110 = vmul.f32 %v109, 0.6931472
    %v111 = vld [vmem:[#allocation7] sm:$0x3]
    %v112 = vrot.slane %v108, 4
    %v113 = vadd.f32 %v108, %v112
    %v114 = vrot.slane %v113, 2
    %v115 = vadd.f32 %v113, %v114
    %v116 = vrot.slane %v115, 1
    %v117 = vadd.f32 %v115, %v116
    %v118 = vrot.slane %v110, 4
    %v119 = vadd.f32 %v110, %v118
    %v120 = vrot.slane %v119, 2
    %v121 = vadd.f32 %v119, %v120
    %v122 = vrot.slane %v121, 1
    %v123 = vadd.f32 %v121, %v122
    %vm126 = vcmask 1041409
    %v127 = vsel %vm126, %v123, %v117
    %v129 = vadd.f32 %v111, %v127
    %130 = vst [vmem:[#allocation7] sm:$0x3] %v129
    %v131 = vld [vmem:[#allocation8] sm:$0x3]
    %v132 = vmul.f32 %v108, %v108
    %v133 = vmul.f32 %v110, %v110
    %v134 = vrot.slane %v132, 4
    %v135 = vadd.f32 %v132, %v134
    %v136 = vrot.slane %v135, 2
    %v137 = vadd.f32 %v135, %v136
    %v138 = vrot.slane %v137, 1
    %v139 = vadd.f32 %v137, %v138
    %v140 = vrot.slane %v133, 4
    %v141 = vadd.f32 %v133, %v140
    %v142 = vrot.slane %v141, 2
    %v143 = vadd.f32 %v141, %v142
    %v144 = vrot.slane %v143, 1
    %v145 = vadd.f32 %v143, %v144
    %v148 = vsel %vm126, %v145, %v139
    %v150 = vadd.f32 %v131, %v148
    %151 = vst [vmem:[#allocation8] sm:$0x3] %v150
    // Predicated region
    $region22: #{tpu_custom_call.1} parent=1 // pred_check
      _
    $region23: #{tpu_custom_call.1} parent=1 // pred_check_branch
      %153 = sbr.rel (0) target = $region25
    $region24: #{tpu_custom_call.1} parent=1 // pred_region
      %155 = vsyncadd [#allocation4], 0
      %s157 = sshll.u32 [#allocation7], 4
      %s158 = int_to_ptr.vmem [resolvable:$true] %s157
      %s159 = sshll.u32 %s2, 4
      %s160 = int_to_ptr.hbm [resolvable:$true] %s159
      %162 = dma.vmem_to_hbm [thread:$0]  %s158, 32, %s160, [#allocation4]
    $region25: #{tpu_custom_call.1} parent=1 // pred_fallthru
      _
    // Predicated region
    $region26: #{tpu_custom_call.1} parent=1 // pred_check
      _
    $region27: #{tpu_custom_call.1} parent=1 // pred_check_branch
      %164 = sbr.rel (0) target = $region29
    $region28: #{tpu_custom_call.1} parent=1 // pred_region
      %166 = vsyncadd [#allocation9], 0
      %s168 = sshll.u32 [#allocation8], 4
      %s169 = int_to_ptr.vmem [resolvable:$true] %s168
      %s170 = sshll.u32 %s3, 4
      %s171 = int_to_ptr.hbm [resolvable:$true] %s170
      %173 = dma.vmem_to_hbm [thread:$0]  %s169, 32, %s171, [#allocation9]
    $region29: #{tpu_custom_call.1} parent=1 // pred_fallthru
      _
    // Predicated region
    $region30: #{tpu_custom_call.1} parent=1 // pred_check
      _
    $region31: #{tpu_custom_call.1} parent=1 // pred_check_branch
      %175 = sbr.rel (0) target = $region33
    $region32: #{tpu_custom_call.1} parent=1 // pred_region
      %177 = dma.done [#allocation4], 32
    $region33: #{tpu_custom_call.1} parent=1 // pred_fallthru
      _
    // Predicated region
    $region34: #{tpu_custom_call.1} parent=1 // pred_check
      _
    $region35: #{tpu_custom_call.1} parent=1 // pred_check_branch
      %179 = sbr.rel (0) target = $region37
    $region36: #{tpu_custom_call.1} parent=1 // pred_region
      %181 = dma.done [#allocation9], 32
    $region37: #{tpu_custom_call.1} parent=1 // pred_fallthru
      _
    %182 = vsyncpa [#allocation3], 1
    %183 = vsyncpa [#allocation6], 1
    %184 = vsyncpa [#allocation4], 1
    %185 = vsyncpa [#allocation9], 1

</llo_original>
